<compile_context>
chip_gen: v7x
topology: tpu7x:2x2x1
jax: 0.10.0
libtpu: 0.0.40
codegen_flags: <defaults>
</compile_context>

<pallas_src>
import functools

import jax
import jax.numpy as jnp
from jax import lax
from jax.experimental import pallas as pl
from jax.experimental.pallas import tpu as pltpu

TEMPERATURE = 0.1
_LANE = 128


def _round_up(x, m):
    return ((x + m - 1) // m) * m


def _cdiv(a, b):
    return (a + b - 1) // b


def _contrastive_head_kernel(pos_ref, neg_ref, out_ref, m_ref, s_ref, *,
                             inv_temp, full_k, tk):
    # inv_temp / full_k / tk are Python scalars baked in via functools.partial.
    k = pl.program_id(1)
    nk = pl.num_programs(1)

    @pl.when(k == 0)
    def _init():
        # Online LSE over the negatives only; pos is folded in at finalize.
        m_ref[...] = jnp.full_like(m_ref, -jnp.inf)
        s_ref[...] = jnp.zeros_like(s_ref)

    neg = neg_ref[...].astype(jnp.float32)                       # (tn, tk)

    def update(block):
        m_old = m_ref[...]                                       # (tn, 1)
        m_new = jnp.maximum(m_old, jnp.max(block, axis=1, keepdims=True))
        s_ref[...] = (s_ref[...] * jnp.exp((m_old - m_new) * inv_temp)
                      + jnp.sum(jnp.exp((block - m_new) * inv_temp),
                                axis=1, keepdims=True))
        m_ref[...] = m_new

    if full_k % tk != 0:
        # Ragged last K block: mask out-of-range columns with -inf so they
        # never win the max and contribute exp(-inf) = 0 to the sum.  Only
        # the last block pays for the iota/compare/select.
        is_last = k == nk - 1

        @pl.when(is_last)
        def _masked():
            col = k * tk + lax.broadcasted_iota(jnp.int32, neg.shape, 1)
            update(jnp.where(col < full_k, neg, -jnp.inf))

        @pl.when(jnp.logical_not(is_last))
        def _unmasked():
            update(neg)
    else:
        update(neg)

    @pl.when(k == nk - 1)
    def _finalize():
        # loss_i = logsumexp([pos_i/T, neg_i/T]) - pos_i/T
        #        = softplus((m_i - pos_i)/T + log(s_i))   (stable softplus)
        pos = pos_ref[...].astype(jnp.float32)                   # (tn, 1)
        x = (m_ref[...] - pos) * inv_temp + jnp.log(s_ref[...])
        out_ref[...] = jnp.maximum(x, 0.0) + jnp.log(1.0 + jnp.exp(-jnp.abs(x)))


def contrastive_head_loss(pos, neg, temperature=TEMPERATURE, *, tn=256, tk=8192):
    """pos: (N, 1), neg: (N, K)  (f32 or bf16). Returns {'loss': f32 scalar}."""
    n, one = pos.shape
    assert one == 1
    n2, k = neg.shape
    assert n2 == n and k >= 1

    itemsize = jnp.dtype(neg.dtype).itemsize
    sub = {4: 8, 2: 16, 1: 32}.get(itemsize, 8)          # sublane multiple per dtype

    # N tile: aim for >= 2 N blocks so the "parallel" axis can shard across
    # v7x's two TensorCores; sublane aligned, capped at the requested tn.
    tn = min(tn, _round_up(_cdiv(n, 2), sub))
    tn = max(_round_up(tn, sub), sub)

    # K tile: lane aligned, no larger than (padded) K, and capped so one neg
    # block stays <= 4 MiB (double-buffered <= 8 MiB of VMEM).
    max_block_bytes = 4 * 1024 * 1024
    tk_cap = max(_LANE, ((max_block_bytes // (tn * itemsize)) // _LANE) * _LANE)
    tk = min(tk, tk_cap, _round_up(k, _LANE))
    tk = max(_round_up(tk, _LANE), _LANE)

    grid = (_cdiv(n, tn), _cdiv(k, tk))

    kernel = functools.partial(
        _contrastive_head_kernel,
        inv_temp=float(1.0 / temperature), full_k=int(k), tk=int(tk))

    cost = pl.CostEstimate(
        flops=3 * n * k,
        transcendentals=n * k,
        bytes_accessed=n * k * itemsize + n * jnp.dtype(pos.dtype).itemsize + n * 4,
    )

    per_row = pl.pallas_call(
        kernel,
        out_shape=jax.ShapeDtypeStruct((n, 1), jnp.float32),
        grid_spec=pltpu.PrefetchScalarGridSpec(
            num_scalar_prefetch=0,
            grid=grid,
            in_specs=[
                # pos: fetched once per N block (same block index for all j),
                # only read in the finalize step.
                pl.BlockSpec((tn, 1), lambda i, j: (i, 0)),
                # neg: streamed over K (reduction axis last).
                pl.BlockSpec((tn, tk), lambda i, j: (i, j)),
            ],
            out_specs=pl.BlockSpec((tn, 1), lambda i, j: (i, 0)),
            scratch_shapes=[
                pltpu.VMEM((tn, 1), jnp.float32),   # running row max m
                pltpu.VMEM((tn, 1), jnp.float32),   # running row exp-sum s
            ],
        ),
        compiler_params=pltpu.CompilerParams(
            dimension_semantics=("parallel", "arbitrary"),
        ),
        cost_estimate=cost,
    )(pos, neg)

    # Mean over the real rows, done in JAX (out_shape is exactly (N, 1), so the
    # ragged last N block's out-of-range rows are never materialized).
    loss = jnp.mean(per_row[:, 0])
    return {"loss": loss}


def _reference_loss(pos, neg, temperature=TEMPERATURE):
    logits = jnp.concatenate([pos, neg], axis=1).astype(jnp.float32) / temperature
    lse = jax.scipy.special.logsumexp(logits, axis=1)
    return jnp.mean(lse - logits[:, 0])


if __name__ == "__main__":
    key = jax.random.PRNGKey(0)
    k1, k2 = jax.random.split(key)
    # N samples, 1 positive + K negatives each.  K=300 (not a multiple of 128)
    # exercises the in-kernel ragged-block masking; tk=128 forces a multi-step
    # online LSE over the K grid axis.
    N, K = 8, 300
    pos = jax.random.normal(k1, (N, 1), dtype=jnp.float32)
    neg = jax.random.normal(k2, (N, K), dtype=jnp.float32)

    # f32 inputs, small K tile -> multi-step streaming + masked last block.
    loss = jax.block_until_ready(contrastive_head_loss(pos, neg, tk=128)["loss"])
    ref = _reference_loss(pos, neg)
    assert jnp.allclose(loss, ref, rtol=1e-5, atol=1e-4), (loss, ref)

    # bf16 negatives (halves HBM traffic for the only large operand), default
    # tiles -> single ragged K block, bf16->f32 upcast path.
    neg_bf16 = neg.astype(jnp.bfloat16)
    loss_bf = jax.block_until_ready(contrastive_head_loss(pos, neg_bf16)["loss"])
    ref_bf = _reference_loss(pos, neg_bf16.astype(jnp.float32))
    assert jnp.allclose(loss_bf, ref_bf, rtol=1e-4, atol=1e-3), (loss_bf, ref_bf)

    print("KERNEL_OK")
</pallas_src>

<mosaic_0001>
module attributes {stable_mosaic.version = 11 : i64} {
  func.func @_contrastive_head_kernel(%arg0: i32, %arg1: i32, %arg2: memref<8x1xf32, #tpu.memory_space<vmem>>, %arg3: memref<8x128xf32, #tpu.memory_space<vmem>>, %arg4: memref<8x1xf32, #tpu.memory_space<vmem>>, %arg5: memref<8x1xf32, #tpu.memory_space<vmem>>, %arg6: memref<8x1xf32, #tpu.memory_space<vmem>>) attributes {dimension_semantics = [#tpu.dimension_semantics<parallel>, #tpu.dimension_semantics<arbitrary>], iteration_bounds = array<i64: 1, 3>, scalar_prefetch = 0 : i64, scratch_operands = 2 : i64, tpu.core_type = #tpu.core_type<tc>, window_params = [{transform_indices = @transform_0, window_bounds = array<i64: 8, 1>}, {transform_indices = @transform_1, window_bounds = array<i64: 8, 128>}, {transform_indices = @transform_2, window_bounds = array<i64: 8, 1>}]} {
    %c0_i32 = arith.constant 0 : i32
    %0 = arith.cmpi eq, %arg1, %c0_i32 : i32
    %1 = arith.extui %0 : i1 to i32
    %c0_i32_0 = arith.constant 0 : i32
    %2 = arith.cmpi ne, %1, %c0_i32_0 : i32
    scf.if %2 {
      %cst = arith.constant 0xFF800000 : f32
      %13 = vector.broadcast %cst : f32 to vector<8x1xf32>
      %c0_6 = arith.constant 0 : index
      %c0_7 = arith.constant 0 : index
      %14 = vector.load %arg5[%c0_6, %c0_7] : memref<8x1xf32, #tpu.memory_space<vmem>>, vector<8x1xf32>
      tpu.vector_store %arg5[%c0_6, %c0_7], %13 {strides = array<i32>} : memref<8x1xf32, #tpu.memory_space<vmem>>, vector<8x1xf32>,
      %cst_8 = arith.constant 0.000000e+00 : f32
      %15 = vector.broadcast %cst_8 : f32 to vector<8x1xf32>
      %c0_9 = arith.constant 0 : index
      %c0_10 = arith.constant 0 : index
      %16 = vector.load %arg6[%c0_9, %c0_10] : memref<8x1xf32, #tpu.memory_space<vmem>>, vector<8x1xf32>
      tpu.vector_store %arg6[%c0_9, %c0_10], %15 {strides = array<i32>} : memref<8x1xf32, #tpu.memory_space<vmem>>, vector<8x1xf32>,
    } else {
    }
    %c0 = arith.constant 0 : index
    %c0_1 = arith.constant 0 : index
    %3 = vector.load %arg3[%c0, %c0_1] : memref<8x128xf32, #tpu.memory_space<vmem>>, vector<8x128xf32>
    %c2_i32 = arith.constant 2 : i32
    %4 = arith.cmpi eq, %arg1, %c2_i32 : i32
    %5 = arith.extui %4 : i1 to i32
    %c0_i32_2 = arith.constant 0 : i32
    %6 = arith.cmpi ne, %5, %c0_i32_2 : i32
    scf.if %6 {
      %c128_i32 = arith.constant 128 : i32
      %13 = arith.muli %arg1, %c128_i32 : i32
      %14 = tpu.iota {dimensions = array<i32: 1>} : vector<8x128xi32>
      %15 = vector.broadcast %13 : i32 to vector<8x128xi32>
      %16 = arith.addi %15, %14 : vector<8x128xi32>
      %c300_i32 = arith.constant 300 : i32
      %17 = vector.broadcast %c300_i32 : i32 to vector<8x128xi32>
      %18 = arith.cmpi slt, %16, %17 : vector<8x128xi32>
      %cst = arith.constant 0xFF800000 : f32
      %19 = vector.broadcast %cst : f32 to vector<8x128xf32>
      %20 = arith.select %18, %3, %19 : vector<8x128xi1>, vector<8x128xf32>
      %c0_6 = arith.constant 0 : index
      %c0_7 = arith.constant 0 : index
      %21 = vector.load %arg5[%c0_6, %c0_7] : memref<8x1xf32, #tpu.memory_space<vmem>>, vector<8x1xf32>
      %cst_8 = arith.constant dense<0xFF800000> : vector<8xf32>
      %22 = vector.multi_reduction <maximumf>, %20, %cst_8 [1] : vector<8x128xf32> to vector<8xf32>
      %23 = vector.shape_cast %22 : vector<8xf32> to vector<8x1xf32>
      %24 = arith.maximumf %21, %23 : vector<8x1xf32>
      %c0_9 = arith.constant 0 : index
      %c0_10 = arith.constant 0 : index
      %25 = vector.load %arg6[%c0_9, %c0_10] : memref<8x1xf32, #tpu.memory_space<vmem>>, vector<8x1xf32>
      %26 = arith.subf %21, %24 : vector<8x1xf32>
      %cst_11 = arith.constant 1.000000e+01 : f32
      %27 = vector.broadcast %cst_11 : f32 to vector<8x1xf32>
      %28 = arith.mulf %26, %27 : vector<8x1xf32>
      %29 = math.exp %28 : vector<8x1xf32>
      %30 = arith.mulf %25, %29 : vector<8x1xf32>
      %31 = vector.broadcast %24 : vector<8x1xf32> to vector<8x128xf32>
      %32 = arith.subf %20, %31 : vector<8x128xf32>
      %cst_12 = arith.constant 1.000000e+01 : f32
      %33 = vector.broadcast %cst_12 : f32 to vector<8x128xf32>
      %34 = arith.mulf %32, %33 : vector<8x128xf32>
      %35 = math.exp %34 : vector<8x128xf32>
      %cst_13 = arith.constant dense<0.000000e+00> : vector<8xf32>
      %36 = vector.multi_reduction <add>, %35, %cst_13 [1] : vector<8x128xf32> to vector<8xf32>
      %37 = vector.shape_cast %36 : vector<8xf32> to vector<8x1xf32>
      %38 = arith.addf %30, %37 : vector<8x1xf32>
      %c0_14 = arith.constant 0 : index
      %c0_15 = arith.constant 0 : index
      %39 = vector.load %arg6[%c0_14, %c0_15] : memref<8x1xf32, #tpu.memory_space<vmem>>, vector<8x1xf32>
      tpu.vector_store %arg6[%c0_14, %c0_15], %38 {strides = array<i32>} : memref<8x1xf32, #tpu.memory_space<vmem>>, vector<8x1xf32>,
      %c0_16 = arith.constant 0 : index
      %c0_17 = arith.constant 0 : index
      %40 = vector.load %arg5[%c0_16, %c0_17] : memref<8x1xf32, #tpu.memory_space<vmem>>, vector<8x1xf32>
      tpu.vector_store %arg5[%c0_16, %c0_17], %24 {strides = array<i32>} : memref<8x1xf32, #tpu.memory_space<vmem>>, vector<8x1xf32>,
    } else {
    }
    %true = arith.constant true
    %7 = arith.xori %4, %true : i1
    %8 = arith.extui %7 : i1 to i32
    %c0_i32_3 = arith.constant 0 : i32
    %9 = arith.cmpi ne, %8, %c0_i32_3 : i32
    scf.if %9 {
      %c0_6 = arith.constant 0 : index
      %c0_7 = arith.constant 0 : index
      %13 = vector.load %arg5[%c0_6, %c0_7] : memref<8x1xf32, #tpu.memory_space<vmem>>, vector<8x1xf32>
      %cst = arith.constant dense<0xFF800000> : vector<8xf32>
      %14 = vector.multi_reduction <maximumf>, %3, %cst [1] : vector<8x128xf32> to vector<8xf32>
      %15 = vector.shape_cast %14 : vector<8xf32> to vector<8x1xf32>
      %16 = arith.maximumf %13, %15 : vector<8x1xf32>
      %c0_8 = arith.constant 0 : index
      %c0_9 = arith.constant 0 : index
      %17 = vector.load %arg6[%c0_8, %c0_9] : memref<8x1xf32, #tpu.memory_space<vmem>>, vector<8x1xf32>
      %18 = arith.subf %13, %16 : vector<8x1xf32>
      %cst_10 = arith.constant 1.000000e+01 : f32
      %19 = vector.broadcast %cst_10 : f32 to vector<8x1xf32>
      %20 = arith.mulf %18, %19 : vector<8x1xf32>
      %21 = math.exp %20 : vector<8x1xf32>
      %22 = arith.mulf %17, %21 : vector<8x1xf32>
      %23 = vector.broadcast %16 : vector<8x1xf32> to vector<8x128xf32>
      %24 = arith.subf %3, %23 : vector<8x128xf32>
      %cst_11 = arith.constant 1.000000e+01 : f32
      %25 = vector.broadcast %cst_11 : f32 to vector<8x128xf32>
      %26 = arith.mulf %24, %25 : vector<8x128xf32>
      %27 = math.exp %26 : vector<8x128xf32>
      %cst_12 = arith.constant dense<0.000000e+00> : vector<8xf32>
      %28 = vector.multi_reduction <add>, %27, %cst_12 [1] : vector<8x128xf32> to vector<8xf32>
      %29 = vector.shape_cast %28 : vector<8xf32> to vector<8x1xf32>
      %30 = arith.addf %22, %29 : vector<8x1xf32>
      %c0_13 = arith.constant 0 : index
      %c0_14 = arith.constant 0 : index
      %31 = vector.load %arg6[%c0_13, %c0_14] : memref<8x1xf32, #tpu.memory_space<vmem>>, vector<8x1xf32>
      tpu.vector_store %arg6[%c0_13, %c0_14], %30 {strides = array<i32>} : memref<8x1xf32, #tpu.memory_space<vmem>>, vector<8x1xf32>,
      %c0_15 = arith.constant 0 : index
      %c0_16 = arith.constant 0 : index
      %32 = vector.load %arg5[%c0_15, %c0_16] : memref<8x1xf32, #tpu.memory_space<vmem>>, vector<8x1xf32>
      tpu.vector_store %arg5[%c0_15, %c0_16], %16 {strides = array<i32>} : memref<8x1xf32, #tpu.memory_space<vmem>>, vector<8x1xf32>,
    } else {
    }
    %c2_i32_4 = arith.constant 2 : i32
    %10 = arith.cmpi eq, %arg1, %c2_i32_4 : i32
    %11 = arith.extui %10 : i1 to i32
    %c0_i32_5 = arith.constant 0 : i32
    %12 = arith.cmpi ne, %11, %c0_i32_5 : i32
    scf.if %12 {
      %c0_6 = arith.constant 0 : index
      %c0_7 = arith.constant 0 : index
      %13 = vector.load %arg2[%c0_6, %c0_7] : memref<8x1xf32, #tpu.memory_space<vmem>>, vector<8x1xf32>
      %c0_8 = arith.constant 0 : index
      %c0_9 = arith.constant 0 : index
      %14 = vector.load %arg5[%c0_8, %c0_9] : memref<8x1xf32, #tpu.memory_space<vmem>>, vector<8x1xf32>
      %15 = arith.subf %14, %13 : vector<8x1xf32>
      %cst = arith.constant 1.000000e+01 : f32
      %16 = vector.broadcast %cst : f32 to vector<8x1xf32>
      %17 = arith.mulf %15, %16 : vector<8x1xf32>
      %c0_10 = arith.constant 0 : index
      %c0_11 = arith.constant 0 : index
      %18 = vector.load %arg6[%c0_10, %c0_11] : memref<8x1xf32, #tpu.memory_space<vmem>>, vector<8x1xf32>
      %19 = math.log %18 : vector<8x1xf32>
      %20 = arith.addf %17, %19 : vector<8x1xf32>
      %cst_12 = arith.constant 0.000000e+00 : f32
      %21 = vector.broadcast %cst_12 : f32 to vector<8x1xf32>
      %22 = arith.maximumf %20, %21 : vector<8x1xf32>
      %23 = math.absf %20 : vector<8x1xf32>
      %cst_13 = arith.constant 0.000000e+00 : f32
      %24 = vector.broadcast %cst_13 : f32 to vector<8x1xf32>
      %25 = arith.subf %24, %23 : vector<8x1xf32>
      %26 = math.exp %25 : vector<8x1xf32>
      %cst_14 = arith.constant 1.000000e+00 : f32
      %27 = vector.broadcast %cst_14 : f32 to vector<8x1xf32>
      %28 = arith.addf %27, %26 : vector<8x1xf32>
      %29 = math.log %28 : vector<8x1xf32>
      %30 = arith.addf %22, %29 : vector<8x1xf32>
      %c0_15 = arith.constant 0 : index
      %c0_16 = arith.constant 0 : index
      %31 = vector.load %arg4[%c0_15, %c0_16] : memref<8x1xf32, #tpu.memory_space<vmem>>, vector<8x1xf32>
      tpu.vector_store %arg4[%c0_15, %c0_16], %30 {strides = array<i32>} : memref<8x1xf32, #tpu.memory_space<vmem>>, vector<8x1xf32>,
    } else {
    }
    return
  }
  func.func @transform_0(%arg0: i32, %arg1: i32) -> (i32, i32) {
    %c0_i32 = arith.constant 0 : i32
    %c0_i32_0 = arith.constant 0 : i32
    return %arg0, %c0_i32 : i32, i32
  }
  func.func @transform_1(%arg0: i32, %arg1: i32) -> (i32, i32) {
    %c0_i32 = arith.constant 0 : i32
    return %arg0, %arg1 : i32, i32
  }
  func.func @transform_2(%arg0: i32, %arg1: i32) -> (i32, i32) {
    %c0_i32 = arith.constant 0 : i32
    %c0_i32_0 = arith.constant 0 : i32
    return %arg0, %c0_i32 : i32, i32
  }
}

</mosaic_0001>

<llo_original>
// kernel: tpu_custom_call.1
$region0: #{tpu_custom_call.1}
  #allocation0 [shape = 'u32[]', space=smem, size = 0x4, offset = 0x4, fixed_abs, tag = 'smem constant byte address 0x4 - core index']
  #allocation1 [shape = 'u32[144,128]{1,0:T(1,128)}', space=vmem, size = 0x12000, scoped, tag = 'internal scratch']
  #allocation2 [shape = 'f32[8,1]{1,0:T(8,128)}', space=vmem, size = 0x1000, scoped, tag = 'scratch operand']
  #allocation3 [shape = 'f32[8,1]{1,0:T(8,128)}', space=vmem, size = 0x1000, scoped, tag = 'scratch operand']
  %s0 = inlined_call_operand.vmem [shape: f32[8,1], index: 0, kind: input, shape index: {}]
  %s1 = inlined_call_operand.hbm [shape: f32[8,300], index: 1, kind: input, shape index: {}]
  %s2 = inlined_call_operand.vmem [shape: f32[8,1], index: 2, kind: output, shape index: {}]
  %s3 = sld [smem:[#allocation0]]
  $region61: #{tpu_custom_call.1} parent=0
    _
  %s5 = ssub.s32 1, %s3
  %s6 = scalar_select 0, %s5, %s3
  $region1: #{tpu_custom_call.1} parent=0
    #allocation4 [shape = 'u8[8192]{0}', space=vmem, size = 0x2000, scoped, tag = 'input window, operand 1']
    #allocation5 [shape = 's32[2]{0}', space=sflag, size = 0x8, scoped, tag = 'scoped memory for tpu_custom_call.1']
    %7 = vsyncpa [#allocation5], 0
    %s8 = scalar_lea.sflag [#allocation5], 1
    %9 = vsyncpa %s8, 0
    loop: start=0, step=1, limit=5
    $region2: #{tpu_custom_call.1} parent=1 // loop_pre_header
      _
    $region3: #{tpu_custom_call.1} parent=1 // loop_header
      %s11 = sphi 0, %s15
      %p12 = scmp.ge.s32.totalorder %s11, 5
      %s18 = sphi 0, %s30
      %s19 = sphi 0, %s26
      %s20 = sphi 0, %s18
      %s21 = sphi 0, %s19
      %s22 = sphi 0, %s20
      %s23 = sphi 0, %s21
      %s33 = sphi 0, %s35
      %s36 = sphi 0, %s33
      %s37 = sphi 0, %s36
      %s53 = sphi 0, %s37
      %s61 = sphi 0, %s63
      %s64 = sphi 0, %s61
      %s65 = sphi 0, %s64
      %s81 = sphi 0, %s65
      %s87 = sphi 0, %s89
      %s90 = sphi 0, %s87
      %s91 = sphi 0, %s90
      %s107 = sphi 0, %s91
    $region4: #{tpu_custom_call.1} parent=1 // loop_header_branch
      %14 = sbr.rel (%p12) target = $region8
    $region5: #{tpu_custom_call.1} parent=1 // loop_body
      %s16 = ssub.s32 %s11, 1
      %s17 = ssub.s32 %s11, 2
      %s24 = sadd.s32 1, %s19
      %p25 = scmp.ge.s32.totalorder %s24, 3
      %s26 = scalar_select %p25, 0, %s24
      %s27 = sadd.s32 1, %s18
      %s28 = scalar_select %p25, %s27, %s18
      %p29 = scmp.ge.s32.totalorder %s28, 1
      %s30 = scalar_select %p29, 0, %s28
      %s31 = ssub.s32 %s18, %s30
      %p32 = scmp.eq.s32.totalorder %s31, 0
      %s34 = sadd.s32 %s33, 1
      %s35 = scalar_select %p32, %s33, %s34
      %p38 = pneg %p32
      %p39 = scmp.eq.s32.totalorder %s11, 2
      %p40 = por %p38, %p39
      %p41 = scmp.ne.s32.totalorder %s33, %s36
      %p42 = scmp.eq.s32.totalorder %s11, 0
      %p43 = por %p41, %p42
      %p44 = scmp.ne.s32.totalorder %s33, %s36
      %p45 = scmp.eq.s32.totalorder %s16, 2
      %p46 = por %p44, %p45
      %p47 = scmp.ne.s32.totalorder %s36, %s37
      %p48 = scmp.eq.s32.totalorder %s16, 0
      %p49 = por %p47, %p48
      %p50 = scmp.ne.s32.totalorder %s36, %s37
      %p51 = scmp.eq.s32.totalorder %s17, 2
      %p52 = por %p50, %p51
      %p54 = scmp.ne.s32.totalorder %s37, %s53
      %p55 = scmp.eq.s32.totalorder %s17, 0
      %p56 = por %p54, %p55
      %s57 = ssub.s32 %s18, %s30
      %s58 = ssub.s32 %s19, %s26
      %s59 = sor.u32 %s57, %s58
      %p60 = scmp.eq.s32.totalorder %s59, 0
      %s62 = sadd.s32 %s61, 1
      %s63 = scalar_select %p60, %s61, %s62
      %p66 = pneg %p60
      %p67 = scmp.eq.s32.totalorder %s11, 2
      %p68 = por %p66, %p67
      %p69 = scmp.ne.s32.totalorder %s61, %s64
      %p70 = scmp.eq.s32.totalorder %s11, 0
      %p71 = por %p69, %p70
      %p72 = scmp.ne.s32.totalorder %s61, %s64
      %p73 = scmp.eq.s32.totalorder %s16, 2
      %p74 = por %p72, %p73
      %p75 = scmp.ne.s32.totalorder %s64, %s65
      %p76 = scmp.eq.s32.totalorder %s16, 0
      %p77 = por %p75, %p76
      %p78 = scmp.ne.s32.totalorder %s64, %s65
      %p79 = scmp.eq.s32.totalorder %s17, 2
      %p80 = por %p78, %p79
      %p82 = scmp.ne.s32.totalorder %s65, %s81
      %p83 = scmp.eq.s32.totalorder %s17, 0
      %p84 = por %p82, %p83
      %s85 = ssub.s32 %s18, %s30
      %p86 = scmp.eq.s32.totalorder %s85, 0
      %s88 = sadd.s32 %s87, 1
      %s89 = scalar_select %p86, %s87, %s88
      %p92 = pneg %p86
      %p93 = scmp.eq.s32.totalorder %s11, 2
      %p94 = por %p92, %p93
      %p95 = scmp.ne.s32.totalorder %s87, %s90
      %p96 = scmp.eq.s32.totalorder %s11, 0
      %p97 = por %p95, %p96
      %p98 = scmp.ne.s32.totalorder %s87, %s90
      %p99 = scmp.eq.s32.totalorder %s16, 2
      %p100 = por %p98, %p99
      %p101 = scmp.ne.s32.totalorder %s90, %s91
      %p102 = scmp.eq.s32.totalorder %s16, 0
      %p103 = por %p101, %p102
      %p104 = scmp.ne.s32.totalorder %s90, %s91
      %p105 = scmp.eq.s32.totalorder %s17, 2
      %p106 = por %p104, %p105
      %p108 = scmp.ne.s32.totalorder %s91, %s107
      %p109 = scmp.eq.s32.totalorder %s17, 0
      %p110 = por %p108, %p109
      %p111 = scmp.le.s32.totalorder 1, %s11
      %p112 = scmp.lt.s32.totalorder %s11, 4
      %p113 = pnand %p111, %p112
      %p114 = pneg %p113
      // Predicated region
      $region9: #{tpu_custom_call.1} parent=5 // pred_check
        _
      $region10: #{tpu_custom_call.1} parent=5 // pred_check_branch
        %116 = sbr.rel (%p113) target = $region12
      $region11: #{tpu_custom_call.1} parent=5 // pred_region
        %s117 = ssub.s32 %s11, 1
        // Predicated region
        $region13: #{tpu_custom_call.1} parent=11 // pred_check
          %p118 = pneg %p49
        $region14: #{tpu_custom_call.1} parent=11 // pred_check_branch
          %120 = sbr.rel (%p118) target = $region16
        $region15: #{tpu_custom_call.1} parent=11 // pred_region
          %p121 = scmp.lt.s32.totalorder %s20, 0
          %s122 = scalar_select %p121, %s20, 0
          %s123 = smul.addr %s122, 8
          %s124 = scalar_lea.vmem %s0, %s123
        $region16: #{tpu_custom_call.1} parent=11 // pred_fallthru
          _
      $region12: #{tpu_custom_call.1} parent=5 // pred_fallthru
        _
      %p125 = scmp.lt.s32.totalorder %s11, 3
      // Predicated region
      $region17: #{tpu_custom_call.1} parent=5 // pred_check
        %p126 = pneg %p125
      $region18: #{tpu_custom_call.1} parent=5 // pred_check_branch
        %128 = sbr.rel (%p126) target = $region20
      $region19: #{tpu_custom_call.1} parent=5 // pred_region
        // Predicated region
        $region21: #{tpu_custom_call.1} parent=19 // pred_check
          %p129 = pneg %p71
        $region22: #{tpu_custom_call.1} parent=19 // pred_check_branch
          %131 = sbr.rel (%p129) target = $region24
        $region23: #{tpu_custom_call.1} parent=19 // pred_region
          %s132 = sand.u32 %s61, 1
          %s133 = scalar_lea.sflag [#allocation5], %s132
          %s134 = sand.u32 %s61, 1
          %s135 = smul.addr %s134, 8
          %s136 = scalar_lea.vmem [#allocation4], %s135
          %s138 = ssub.s32 128, 128
          %139 = vsyncadd %s133, %s138
          %s140 = smul.addr %s18, 3
          %s141 = sadd.s32 %s19, %s140
          %s142 = smul.addr %s141, 128
          %s143 = scalar_lea.hbm %s1, %s142
          %s145 = sshll.u32 %s136, 4
          %s146 = int_to_ptr.vmem [resolvable:$true] %s145
          %148 = dma.hbm_to_vmem [thread:$0]  %s143, 128, %s146, %s133
        $region24: #{tpu_custom_call.1} parent=19 // pred_fallthru
          _
      $region20: #{tpu_custom_call.1} parent=5 // pred_fallthru
        _
      %p149 = scmp.le.s32.totalorder 1, %s11
      %p150 = scmp.lt.s32.totalorder %s11, 4
      %p151 = pnand %p149, %p150
      %p152 = pneg %p151
      // Predicated region
      $region25: #{tpu_custom_call.1} parent=5 // pred_check
        _
      $region26: #{tpu_custom_call.1} parent=5 // pred_check_branch
        %154 = sbr.rel (%p151) target = $region28
      $region27: #{tpu_custom_call.1} parent=5 // pred_region
        %s155 = ssub.s32 %s11, 1
        %s156 = sand.u32 %s64, 1
        %s157 = scalar_lea.sflag [#allocation5], %s156
        %s158 = sand.u32 %s64, 1
        %s159 = smul.addr %s158, 8
        %s160 = scalar_lea.vmem [#allocation4], %s159
        // Predicated region
        $region29: #{tpu_custom_call.1} parent=27 // pred_check
          %p161 = pneg %p77
        $region30: #{tpu_custom_call.1} parent=27 // pred_check_branch
          %163 = sbr.rel (%p161) target = $region32
        $region31: #{tpu_custom_call.1} parent=27 // pred_region
          %164 = dma.done %s157, 128
        $region32: #{tpu_custom_call.1} parent=27 // pred_fallthru
          _
        %p165 = scmp.lt.s32.totalorder %s20, 0
        %s166 = scalar_select %p165, %s20, 0
        %s167 = smul.addr %s166, 8
        %s168 = scalar_lea.vmem %s0, %s167
        %p169 = pneg %p49
        %p170 = pneg %p46
        %s171 = sand.u32 %s64, 1
        %s172 = scalar_lea.sflag [#allocation5], %s171
        %s173 = sand.u32 %s64, 1
        %s174 = smul.addr %s173, 8
        %s175 = scalar_lea.vmem [#allocation4], %s174
        %p176 = pneg %p77
        %p177 = pneg %p74
        %p178 = pneg %p103
        %p179 = pneg %p100
        %p180 = scmp.lt.s32.totalorder %s20, 0
        %s181 = scalar_select %p180, %s20, 0
        %s182 = smul.addr %s181, 8
        %s183 = scalar_lea.vmem %s2, %s182
        %p184 = scmp.lt.s32.totalorder %s20, 0
        %s185 = scalar_select %p184, %s20, 0
        %s186 = smul.addr %s185, 8
        %s187 = scalar_lea.vmem %s0, %s186
        %p188 = scmp.lt.s32.totalorder %s20, 0
        %s189 = scalar_select %p188, %s20, 0
        %s190 = smul.addr %s189, 8
        %s191 = scalar_lea.vmem %s2, %s190
        %p192 = scmp.eq.s32.totalorder %s21, 0
        // Predicated region
        $region33: #{tpu_custom_call.1} parent=27 // pred_check
          %p193 = pneg %p192
        $region34: #{tpu_custom_call.1} parent=27 // pred_check_branch
          %195 = sbr.rel (%p193) target = $region36
        $region35: #{tpu_custom_call.1} parent=27 // pred_region
          %vm196 = vcmask 7168
          %197 = vst.msk [vmem:[#allocation2] sm:$0xff] %vm196, -inf
          %198 = vst.msk [vmem:[#allocation3] sm:$0xff] %vm196, 0.0
        $region36: #{tpu_custom_call.1} parent=27 // pred_fallthru
          _
        %v199 = vld [vmem:[%s160] sm:$0xff]
        %p200 = scmp.eq.s32.totalorder %s21, 2
        // Predicated region
        $region37: #{tpu_custom_call.1} parent=27 // pred_check
          %p201 = pneg %p200
        $region38: #{tpu_custom_call.1} parent=27 // pred_check_branch
          %203 = sbr.rel (%p201) target = $region40
        $region39: #{tpu_custom_call.1} parent=27 // pred_region
          %s204 = smul.u32 %s21, 128
          %v205 = vlaneseq
          %v206 = vand.u32 %v205, 127
          %v207 = vstv %s204
          %v208 = vadd.s32 %v207, %v206
          %vm209 = vcmp.lt.s32.totalorder %v208, 300
          %v210 = vsel %vm209, %v199, -inf
          %v211 = vld [vmem:[#allocation2] sm:$0xff]
          %212 = vmax.xlane.f32.xlu0 %v210
          %v213 = vpop.xlane.xlu0 %212
          %v214 = vmax.f32 %v211, %v213
          %v215 = vld [vmem:[#allocation3] sm:$0xff]
          %v216 = vsub.f32 %v211, %v214
          %v217 = vmul.f32 %v216, 10.0
          %v218 = vmul.f32 %v217, 1.442695
          %v219 = vpow.pop %v218
          %v220 = vmul.f32 %v215, %v219
          %222 = vset.pattern.permute.xlu0 0
          %223 = vperm.xlu0 %222, %v214
          %v224 = vpop.permute.xlu0 %223
          %v226 = vsub.f32 %v210, %v224
          %v227 = vmul.f32 %v226, 10.0
          %v228 = vmul.f32 %v227, 1.442695
          %v229 = vpow.pop %v228
          %230 = vadd.xlane.f32.xlu0 %v229
          %v231 = vpop.xlane.xlu0 %230
          %v232 = vadd.f32 %v220, %v231
          %vm233 = vcmask 7168
          %234 = vst.msk [vmem:[#allocation3] sm:$0xff] %vm233, %v232
          %235 = vst.msk [vmem:[#allocation2] sm:$0xff] %vm233, %v214
        $region40: #{tpu_custom_call.1} parent=27 // pred_fallthru
          _
        %p236 = scmp.ne.s32.totalorder %s21, 2
        // Predicated region
        $region41: #{tpu_custom_call.1} parent=27 // pred_check
          %p237 = pneg %p236
        $region42: #{tpu_custom_call.1} parent=27 // pred_check_branch
          %239 = sbr.rel (%p237) target = $region44
        $region43: #{tpu_custom_call.1} parent=27 // pred_region
          %v240 = vld [vmem:[#allocation2] sm:$0xff]
          %241 = vmax.xlane.f32.xlu0 %v199
          %v242 = vpop.xlane.xlu0 %241
          %v243 = vmax.f32 %v240, %v242
          %v244 = vld [vmem:[#allocation3] sm:$0xff]
          %v245 = vsub.f32 %v240, %v243
          %v246 = vmul.f32 %v245, 10.0
          %v247 = vmul.f32 %v246, 1.442695
          %v248 = vpow.pop %v247
          %v249 = vmul.f32 %v244, %v248
          %251 = vset.pattern.permute.xlu0 0
          %252 = vperm.xlu0 %251, %v243
          %v253 = vpop.permute.xlu0 %252
          %v255 = vsub.f32 %v199, %v253
          %v256 = vmul.f32 %v255, 10.0
          %v257 = vmul.f32 %v256, 1.442695
          %v258 = vpow.pop %v257
          %259 = vadd.xlane.f32.xlu0 %v258
          %v260 = vpop.xlane.xlu0 %259
          %v261 = vadd.f32 %v249, %v260
          %vm262 = vcmask 7168
          %263 = vst.msk [vmem:[#allocation3] sm:$0xff] %vm262, %v261
          %264 = vst.msk [vmem:[#allocation2] sm:$0xff] %vm262, %v243
        $region44: #{tpu_custom_call.1} parent=27 // pred_fallthru
          _
        // Predicated region
        $region45: #{tpu_custom_call.1} parent=27 // pred_check
          %p265 = pneg %p200
        $region46: #{tpu_custom_call.1} parent=27 // pred_check_branch
          %267 = sbr.rel (%p265) target = $region48
        $region47: #{tpu_custom_call.1} parent=27 // pred_region
          %v268 = vld [vmem:[%s187] sm:$0xff]
          %v269 = vld [vmem:[#allocation2] sm:$0xff]
          %v270 = vsub.f32 %v269, %v268
          %v271 = vmul.f32 %v270, 10.0
          %v272 = vld [vmem:[#allocation3] sm:$0xff]
          %v273 = vlog2.pop %v272
          %v274 = vmul.f32 %v273, 0.6931472
          %v275 = vadd.f32 %v271, %v274
          %v276 = vmax.f32 %v275, 0.0
          %v277 = vand.u32 2147483647, %v275
          %v278 = vsub.f32 0.0, %v277
          %v279 = vmul.f32 %v278, 1.442695
          %v280 = vpow.pop %v279
          %v281 = vadd.f32 %v280, 1.0
          %v282 = vlog2.pop %v281
          %v283 = vmul.f32 %v282, 0.6931472
          %v284 = vadd.f32 %v276, %v283
          %vm285 = vcmask 7168
          %286 = vst.msk [vmem:[%s191] sm:$0xff] %vm285, %v284
        $region48: #{tpu_custom_call.1} parent=27 // pred_fallthru
          _
        %p287 = scmp.lt.s32.totalorder %s20, 0
        %s288 = scalar_select %p287, %s20, 0
        %s289 = smul.addr %s288, 8
        %s290 = scalar_lea.vmem %s2, %s289
        // Predicated region
        $region49: #{tpu_custom_call.1} parent=27 // pred_check
          %p291 = pneg %p100
        $region50: #{tpu_custom_call.1} parent=27 // pred_check_branch
          %293 = sbr.rel (%p291) target = $region52
        $region51: #{tpu_custom_call.1} parent=27 // pred_region
          _
        $region52: #{tpu_custom_call.1} parent=27 // pred_fallthru
          _
        // Predicated region
        $region53: #{tpu_custom_call.1} parent=27 // pred_check
          %p294 = pneg %p100
        $region54: #{tpu_custom_call.1} parent=27 // pred_check_branch
          %296 = sbr.rel (%p294) target = $region56
        $region55: #{tpu_custom_call.1} parent=27 // pred_region
          %p297 = scmp.lt.s32.totalorder %s20, 0
          %s298 = scalar_select %p297, %s20, 0
          %s299 = smul.addr %s298, 8
          %s300 = scalar_lea.vmem %s2, %s299
        $region56: #{tpu_custom_call.1} parent=27 // pred_fallthru
          _
      $region28: #{tpu_custom_call.1} parent=5 // pred_fallthru
        _
      %p301 = scmp.le.s32.totalorder 2, %s11
      // Predicated region
      $region57: #{tpu_custom_call.1} parent=5 // pred_check
        %p302 = pneg %p301
      $region58: #{tpu_custom_call.1} parent=5 // pred_check_branch
        %304 = sbr.rel (%p302) target = $region60
      $region59: #{tpu_custom_call.1} parent=5 // pred_region
        %s305 = ssub.s32 %s11, 2
      $region60: #{tpu_custom_call.1} parent=5 // pred_fallthru
        _
    $region6: #{tpu_custom_call.1} parent=1 // loop_footer
      %s15 = sadd.s32 1, %s11
    $region7: #{tpu_custom_call.1} parent=1 // loop_footer_branch
      %10 = sbr.rel target = $region3
    $region8: #{tpu_custom_call.1} parent=1 // loop_exit
      _
    %306 = vsyncpa [#allocation5], 1
    %s307 = scalar_lea.sflag [#allocation5], 1
    %308 = vsyncpa %s307, 1

</llo_original>
